<compile_context>
chip_gen: v7x
topology: tpu7x:2x2x1
jax: 0.10.0
libtpu: 0.0.40
codegen_flags: <defaults>
</compile_context>

<pallas_src>
import functools
import math

import jax
import jax.numpy as jnp
from jax.experimental import pallas as pl
from jax.experimental.pallas import tpu as pltpu


def _self_attn2_kernel(h_ref, wqk_ref, o_ref, *, dim, inv_sqrt_dim):
    """One grid step: a group of `bg` graphs, fully resident in VMEM.

    h_ref  : (bg, N, dim)   node features for bg graphs
    wqk_ref: (dim, 2*dim)   fused [Wq | Wk] projection weight
    o_ref  : (1, bg, dim)   pooled output rows for this group
    """
    h = h_ref[...].astype(jnp.float32)          # (bg, N, dim)
    wqk = wqk_ref[...].astype(jnp.float32)      # (dim, 2*dim)

    # Fused Q/K projection: one MXU pass with the RHS shared across the batch.
    qk = jnp.einsum("bnd,de->bne", h, wqk,
                    preferred_element_type=jnp.float32)       # (bg, N, 2*dim)
    q = qk[:, :, :dim]
    k = qk[:, :, dim:]

    # e = q @ k^T / sqrt(dim); contract on the feature dim so no explicit
    # transpose of k is materialized before the MXU feed.
    e = jnp.einsum("bqd,bkd->bqk", q, k,
                   preferred_element_type=jnp.float32)        # (bg, N, N)
    e = e * inv_sqrt_dim

    # Row-wise softmax (torch: softmax(e, dim=1)), numerically stable.
    e_max = jnp.max(e, axis=-1, keepdims=True)
    p = jnp.exp(e - e_max)
    denom = jnp.sum(p, axis=-1, keepdims=True)
    # Exact reciprocal kept on purpose: preserves 1e-5 agreement with the f32
    # reference; flip to approx=True (EUP vrcp) if that tolerance isn't needed.
    attn = p * pl.reciprocal(denom, approx=False)             # (bg, N, N)

    # attention.mean(dim=0) -> per-graph (N,) vector over the key/node axis.
    n_rows = attn.shape[1]
    attn_mean = jnp.sum(attn, axis=1) * (1.0 / n_rows)        # (bg, N)

    # x = attention_mean @ h, as broadcast-multiply + row reduce (VPU/XLU)
    # instead of an M=1 MXU matvec.
    x = jnp.sum(attn_mean[:, :, None] * h, axis=1)            # (bg, dim)

    o_ref[0] = x.astype(o_ref.dtype)


def self_attention_layer2_batched(h, wq, wk, *, graphs_per_block=8):
    """h: (B, N, dim) f32; wq, wk: (dim, dim) f32. Returns (B, dim) f32."""
    b, n, dim = h.shape
    assert wq.shape == (dim, dim) and wk.shape == (dim, dim)

    # Group size: prefer 8 graphs per grid step (amortizes the ~0.35us/step
    # pipeline overhead, sublane-aligned group); fall back to any divisor of B.
    bg = min(graphs_per_block, b)
    while b % bg:
        bg -= 1
    nb = b // bg

    # Fuse the two projection weights once: qk = h @ [Wq | Wk].
    wqk = jnp.concatenate([wq, wk], axis=1)                   # (dim, 2*dim)

    kernel = functools.partial(
        _self_attn2_kernel, dim=dim, inv_sqrt_dim=1.0 / math.sqrt(dim))

    out = pl.pallas_call(
        kernel,
        out_shape=jax.ShapeDtypeStruct((nb, bg, dim), jnp.float32),
        grid=(nb,),
        in_specs=[
            pl.BlockSpec((bg, n, dim), lambda i: (i, 0, 0)),
            pl.BlockSpec((dim, 2 * dim), lambda i: (0, 0)),
        ],
        out_specs=pl.BlockSpec((1, bg, dim), lambda i: (i, 0, 0)),
        # Batch groups are independent -> "parallel" lets v7x split them
        # across its two TensorCores; no-op on v5e/v6e.
        compiler_params=pltpu.CompilerParams(
            dimension_semantics=("parallel",)),
    )(h, wqk)
    return out.reshape(b, dim)


def self_attention_layer2(h, wq, wk):
    """Single-graph forward matching the PyTorch module: h (N, dim) -> (dim,)."""
    return self_attention_layer2_batched(h[None], wq, wk)[0]


def _xavier_uniform(key, shape, gain):
    fan_in, fan_out = shape
    bound = gain * math.sqrt(6.0 / (fan_in + fan_out))
    return jax.random.uniform(key, shape, jnp.float32, minval=-bound, maxval=bound)


def _reference(h, wq, wk):
    dim = h.shape[1]
    q = h @ wq
    k = h @ wk
    e = (q @ k.T) / math.sqrt(dim)
    attn = jax.nn.softmax(e, axis=1)
    attn_mean = attn.mean(axis=0)
    return attn_mean @ h


if __name__ == "__main__":
    B, N, DIM = 16, 8, 32  # 16 small graphs: 8 nodes each, feature dim 32

    key = jax.random.PRNGKey(0)
    k_h, k_q, k_k = jax.random.split(key, 3)

    h = jax.random.normal(k_h, (B, N, DIM), dtype=jnp.float32)
    gain = 1.414
    Wq = _xavier_uniform(k_q, (DIM, DIM), gain)
    Wk = _xavier_uniform(k_k, (DIM, DIM), gain)

    # Batched path (main optimization: amortize launch/DMA overhead over B).
    out = self_attention_layer2_batched(h, Wq, Wk)
    out = jax.block_until_ready(out)
    assert out.shape == (B, DIM)

    ref = jax.vmap(lambda hg: _reference(hg, Wq, Wk))(h)
    assert jnp.allclose(out, ref, atol=1e-5, rtol=1e-5), (
        f"max abs diff {jnp.max(jnp.abs(out - ref))}"
    )

    # Single-graph path (matches the PyTorch module's forward signature).
    out1 = jax.block_until_ready(self_attention_layer2(h[0], Wq, Wk))
    assert out1.shape == (DIM,)
    assert jnp.allclose(out1, ref[0], atol=1e-5, rtol=1e-5), (
        f"max abs diff {jnp.max(jnp.abs(out1 - ref[0]))}"
    )

    print("KERNEL_OK")
</pallas_src>

<mosaic_0001>
module attributes {stable_mosaic.version = 11 : i64} {
  func.func @_self_attn2_kernel(%arg0: i32, %arg1: memref<8x8x32xf32, #tpu.memory_space<vmem>>, %arg2: memref<32x64xf32, #tpu.memory_space<vmem>>, %arg3: memref<1x8x32xf32, #tpu.memory_space<vmem>>) attributes {dimension_semantics = [#tpu.dimension_semantics<parallel>], iteration_bounds = array<i64: 2>, scalar_prefetch = 0 : i64, scratch_operands = 0 : i64, tpu.core_type = #tpu.core_type<tc>, window_params = [{transform_indices = @transform_0, window_bounds = array<i64: 8, 8, 32>}, {pipeline_mode = #tpu.pipeline_mode<synchronous>, transform_indices = @transform_1, window_bounds = array<i64: 32, 64>}, {transform_indices = @transform_2, window_bounds = array<i64: 1, 8, 32>}]} {
    %c0 = arith.constant 0 : index
    %c0_0 = arith.constant 0 : index
    %c0_1 = arith.constant 0 : index
    %0 = vector.load %arg1[%c0, %c0_0, %c0_1] : memref<8x8x32xf32, #tpu.memory_space<vmem>>, vector<8x8x32xf32>
    %c0_2 = arith.constant 0 : index
    %c0_3 = arith.constant 0 : index
    %1 = vector.load %arg2[%c0_2, %c0_3] : memref<32x64xf32, #tpu.memory_space<vmem>>, vector<32x64xf32>
    "tpu.trace_start"() <{level = 10 : i32, message = "bnd,de->bne"}> : () -> ()
    %cst = arith.constant dense<0.000000e+00> : vector<8x8x64xf32>
    %2 = tpu.matmul %0, %1, %cst {dimension_numbers = #tpu.dot_dimension_numbers<[2], [0], [0, 1], [1], [0, 0, 0, 1, 1, 1], [], []>} : vector<8x8x32xf32>, vector<32x64xf32>, vector<8x8x64xf32> -> vector<8x8x64xf32>
    "tpu.trace_stop"() : () -> ()
    %3 = vector.extract_strided_slice %2 {offsets = [0, 0, 0], sizes = [8, 8, 32], strides = [1, 1, 1]} : vector<8x8x64xf32> to vector<8x8x32xf32>
    %4 = vector.extract_strided_slice %2 {offsets = [0, 0, 32], sizes = [8, 8, 32], strides = [1, 1, 1]} : vector<8x8x64xf32> to vector<8x8x32xf32>
    "tpu.trace_start"() <{level = 10 : i32, message = "bqd,bkd->bqk"}> : () -> ()
    %cst_4 = arith.constant dense<0.000000e+00> : vector<8x8x8xf32>
    %5 = tpu.matmul %3, %4, %cst_4 {dimension_numbers = #tpu.dot_dimension_numbers<[2], [2], [1], [1], [0, 0, 0, 1, 1, 1], [0], [0]>} : vector<8x8x32xf32>, vector<8x8x32xf32>, vector<8x8x8xf32> -> vector<8x8x8xf32>
    "tpu.trace_stop"() : () -> ()
    %cst_5 = arith.constant 0.176776692 : f32
    %6 = vector.broadcast %cst_5 : f32 to vector<8x8x8xf32>
    %7 = arith.mulf %5, %6 : vector<8x8x8xf32>
    %cst_6 = arith.constant dense<0xFF800000> : vector<8x8xf32>
    %8 = vector.multi_reduction <maximumf>, %7, %cst_6 [2] : vector<8x8x8xf32> to vector<8x8xf32>
    %9 = vector.shape_cast %8 : vector<8x8xf32> to vector<8x8x1xf32>
    %10 = vector.broadcast %9 : vector<8x8x1xf32> to vector<8x8x8xf32>
    %11 = arith.subf %7, %10 : vector<8x8x8xf32>
    %12 = math.exp %11 : vector<8x8x8xf32>
    %cst_7 = arith.constant dense<0.000000e+00> : vector<8x8xf32>
    %13 = vector.multi_reduction <add>, %12, %cst_7 [2] : vector<8x8x8xf32> to vector<8x8xf32>
    %14 = vector.shape_cast %13 : vector<8x8xf32> to vector<8x8x1xf32>
    %15 = tpu.reciprocal %14 : vector<8x8x1xf32> -> vector<8x8x1xf32>
    %16 = vector.broadcast %15 : vector<8x8x1xf32> to vector<8x8x8xf32>
    %17 = arith.mulf %12, %16 : vector<8x8x8xf32>
    %cst_8 = arith.constant dense<0.000000e+00> : vector<8x8xf32>
    %18 = vector.multi_reduction <add>, %17, %cst_8 [1] : vector<8x8x8xf32> to vector<8x8xf32>
    %cst_9 = arith.constant 1.250000e-01 : f32
    %19 = vector.broadcast %cst_9 : f32 to vector<8x8xf32>
    %20 = arith.mulf %18, %19 : vector<8x8xf32>
    %21 = vector.shape_cast %20 : vector<8x8xf32> to vector<8x8x1xf32>
    %22 = vector.broadcast %21 : vector<8x8x1xf32> to vector<8x8x32xf32>
    %23 = arith.mulf %22, %0 : vector<8x8x32xf32>
    %cst_10 = arith.constant dense<0.000000e+00> : vector<8x32xf32>
    %24 = vector.multi_reduction <add>, %23, %cst_10 [1] : vector<8x8x32xf32> to vector<8x32xf32>
    %c0_11 = arith.constant 0 : index
    %c0_12 = arith.constant 0 : index
    %c0_13 = arith.constant 0 : index
    %25 = vector.load %arg3[%c0_11, %c0_12, %c0_13] : memref<1x8x32xf32, #tpu.memory_space<vmem>>, vector<1x8x32xf32>
    %26 = vector.shape_cast %25 : vector<1x8x32xf32> to vector<8x32xf32>
    %27 = vector.shape_cast %24 : vector<8x32xf32> to vector<1x8x32xf32>
    tpu.vector_store %arg3[%c0_11, %c0_12, %c0_13], %27 {strides = array<i32>} : memref<1x8x32xf32, #tpu.memory_space<vmem>>, vector<1x8x32xf32>,
    return
  }
  func.func @transform_0(%arg0: i32) -> (i32, i32, i32) {
    %c0_i32 = arith.constant 0 : i32
    %c0_i32_0 = arith.constant 0 : i32
    %c0_i32_1 = arith.constant 0 : i32
    return %arg0, %c0_i32, %c0_i32_0 : i32, i32, i32
  }
  func.func @transform_1(%arg0: i32) -> (i32, i32) {
    %c0_i32 = arith.constant 0 : i32
    %c0_i32_0 = arith.constant 0 : i32
    %c0_i32_1 = arith.constant 0 : i32
    return %c0_i32, %c0_i32_0 : i32, i32
  }
  func.func @transform_2(%arg0: i32) -> (i32, i32, i32) {
    %c0_i32 = arith.constant 0 : i32
    %c0_i32_0 = arith.constant 0 : i32
    %c0_i32_1 = arith.constant 0 : i32
    return %arg0, %c0_i32, %c0_i32_0 : i32, i32, i32
  }
}

</mosaic_0001>

<llo_original>
// kernel: tpu_custom_call.1
$region0: #{tpu_custom_call.1}
  #allocation0 [shape = 'u32[]', space=smem, size = 0x4, offset = 0x4, fixed_abs, tag = 'smem constant byte address 0x4 - core index']
  #allocation1 [shape = 'u32[144,128]{1,0:T(1,128)}', space=vmem, size = 0x12000, scoped, tag = 'internal scratch']
  %s0 = inlined_call_operand.hbm [shape: f32[16,8,32], index: 0, kind: input, shape index: {}]
  %s1 = inlined_call_operand.hbm [shape: f32[32,64], index: 1, kind: input, shape index: {}]
  %s2 = inlined_call_operand.hbm [shape: f32[2,8,32], index: 2, kind: output, shape index: {}]
  %s3 = sld [smem:[#allocation0]]
  $region49: #{tpu_custom_call.1} parent=0
    _
  %s5 = ssub.s32 1, %s3
  %s6 = scalar_select 0, %s5, %s3
  $region1: #{tpu_custom_call.1} parent=0
    #allocation2 [shape = 'u8[65536]{0}', space=vmem, size = 0x10000, scoped, tag = 'input window, operand 0']
    #allocation3 [shape = 's32[2]{0}', space=sflag, size = 0x8, scoped, tag = 'scoped memory for tpu_custom_call.1']
    #allocation4 [shape = 's32[2]{0}', space=sflag, size = 0x8, scoped, tag = 'scoped memory for tpu_custom_call.1']
    #allocation5 [shape = 'u8[16384]{0}', space=vmem, size = 0x4000, scoped, tag = 'input window, operand 1, single buffered']
    #allocation6 [shape = 's32[1]{0}', space=sflag, size = 0x4, scoped, tag = 'scoped memory for tpu_custom_call.1']
    #allocation7 [shape = 'u8[8192]{0}', space=vmem, size = 0x2000, scoped, tag = 'output window, operand 0']
    %7 = vsyncpa [#allocation3], 0
    %s8 = scalar_lea.sflag [#allocation3], 1
    %9 = vsyncpa %s8, 0
    %10 = vsyncpa [#allocation6], 0
    %11 = vsyncpa [#allocation4], 0
    %s12 = scalar_lea.sflag [#allocation4], 1
    %13 = vsyncpa %s12, 0
    loop: start=0, step=1, limit=4
    $region2: #{tpu_custom_call.1} parent=1 // loop_pre_header
      _
    $region3: #{tpu_custom_call.1} parent=1 // loop_header
      %s15 = sphi 0, %s19
      %p16 = scmp.ge.s32.totalorder %s15, 4
      %s25 = sphi 0, %s27
      %s28 = sphi 0, %s25
      %s29 = sphi 0, %s28
      %s45 = sphi 0, %s29
      %s49 = sphi 0, %s49
      %s51 = sphi 0, %s49
      %s52 = sphi 0, %s51
      %s66 = sphi 0, %s52
      %s72 = sphi 0, %s74
      %s75 = sphi 0, %s72
      %s76 = sphi 0, %s75
      %s92 = sphi 0, %s76
    $region4: #{tpu_custom_call.1} parent=1 // loop_header_branch
      %18 = sbr.rel (%p16) target = $region8
    $region5: #{tpu_custom_call.1} parent=1 // loop_body
      %s20 = ssub.s32 %s15, 1
      %s21 = ssub.s32 %s15, 2
      %s22 = sadd.s32 %s15, 1
      %s23 = ssub.s32 %s15, %s22
      %p24 = scmp.eq.s32.totalorder %s23, 0
      %s26 = sadd.s32 %s25, 1
      %s27 = scalar_select %p24, %s25, %s26
      %p30 = pneg %p24
      %p31 = scmp.eq.s32.totalorder %s15, 1
      %p32 = por %p30, %p31
      %p33 = scmp.ne.s32.totalorder %s25, %s28
      %p34 = scmp.eq.s32.totalorder %s15, 0
      %p35 = por %p33, %p34
      %p36 = scmp.ne.s32.totalorder %s25, %s28
      %p37 = scmp.eq.s32.totalorder %s20, 1
      %p38 = por %p36, %p37
      %p39 = scmp.ne.s32.totalorder %s28, %s29
      %p40 = scmp.eq.s32.totalorder %s20, 0
      %p41 = por %p39, %p40
      %p42 = scmp.ne.s32.totalorder %s28, %s29
      %p43 = scmp.eq.s32.totalorder %s21, 1
      %p44 = por %p42, %p43
      %p46 = scmp.ne.s32.totalorder %s29, %s45
      %p47 = scmp.eq.s32.totalorder %s21, 0
      %p48 = por %p46, %p47
      %s50 = sadd.s32 %s49, 1
      %p53 = scmp.eq.s32.totalorder %s15, 1
      %p54 = scmp.ne.s32.totalorder %s49, %s51
      %p55 = scmp.eq.s32.totalorder %s15, 0
      %p56 = por %p54, %p55
      %p57 = scmp.ne.s32.totalorder %s49, %s51
      %p58 = scmp.eq.s32.totalorder %s20, 1
      %p59 = por %p57, %p58
      %p60 = scmp.ne.s32.totalorder %s51, %s52
      %p61 = scmp.eq.s32.totalorder %s20, 0
      %p62 = por %p60, %p61
      %p63 = scmp.ne.s32.totalorder %s51, %s52
      %p64 = scmp.eq.s32.totalorder %s21, 1
      %p65 = por %p63, %p64
      %p67 = scmp.ne.s32.totalorder %s52, %s66
      %p68 = scmp.eq.s32.totalorder %s21, 0
      %p69 = por %p67, %p68
      %s70 = ssub.s32 %s15, %s22
      %p71 = scmp.eq.s32.totalorder %s70, 0
      %s73 = sadd.s32 %s72, 1
      %s74 = scalar_select %p71, %s72, %s73
      %p77 = pneg %p71
      %p78 = scmp.eq.s32.totalorder %s15, 1
      %p79 = por %p77, %p78
      %p80 = scmp.ne.s32.totalorder %s72, %s75
      %p81 = scmp.eq.s32.totalorder %s15, 0
      %p82 = por %p80, %p81
      %p83 = scmp.ne.s32.totalorder %s72, %s75
      %p84 = scmp.eq.s32.totalorder %s20, 1
      %p85 = por %p83, %p84
      %p86 = scmp.ne.s32.totalorder %s75, %s76
      %p87 = scmp.eq.s32.totalorder %s20, 0
      %p88 = por %p86, %p87
      %p89 = scmp.ne.s32.totalorder %s75, %s76
      %p90 = scmp.eq.s32.totalorder %s21, 1
      %p91 = por %p89, %p90
      %p93 = scmp.ne.s32.totalorder %s76, %s92
      %p94 = scmp.eq.s32.totalorder %s21, 0
      %p95 = por %p93, %p94
      %p96 = scmp.le.s32.totalorder 1, %s15
      %p97 = scmp.lt.s32.totalorder %s15, 3
      %p98 = pnand %p96, %p97
      %p99 = pneg %p98
      // Predicated region
      $region9: #{tpu_custom_call.1} parent=5 // pred_check
        _
      $region10: #{tpu_custom_call.1} parent=5 // pred_check_branch
        %101 = sbr.rel (%p98) target = $region12
      $region11: #{tpu_custom_call.1} parent=5 // pred_region
        %s102 = ssub.s32 %s15, 1
        // Predicated region
        $region13: #{tpu_custom_call.1} parent=11 // pred_check
          %p103 = pneg %p62
        $region14: #{tpu_custom_call.1} parent=11 // pred_check_branch
          %105 = sbr.rel (%p103) target = $region16
        $region15: #{tpu_custom_call.1} parent=11 // pred_region
          %s107 = ssub.s32 512, 512
          %108 = vsyncadd [#allocation6], %s107
          %s109 = sshll.u32 [#allocation5], 4
          %s110 = int_to_ptr.vmem [resolvable:$true] %s109
          %115 = dma.hbm_to_vmem [thread:$0]  %s1, 512, %s110, [#allocation6], 128, 128, 8
        $region16: #{tpu_custom_call.1} parent=11 // pred_fallthru
          _
      $region12: #{tpu_custom_call.1} parent=5 // pred_fallthru
        _
      %p116 = scmp.lt.s32.totalorder %s15, 2
      // Predicated region
      $region17: #{tpu_custom_call.1} parent=5 // pred_check
        %p117 = pneg %p116
      $region18: #{tpu_custom_call.1} parent=5 // pred_check_branch
        %119 = sbr.rel (%p117) target = $region20
      $region19: #{tpu_custom_call.1} parent=5 // pred_region
        // Predicated region
        $region21: #{tpu_custom_call.1} parent=19 // pred_check
          %p120 = pneg %p35
        $region22: #{tpu_custom_call.1} parent=19 // pred_check_branch
          %122 = sbr.rel (%p120) target = $region24
        $region23: #{tpu_custom_call.1} parent=19 // pred_region
          %s123 = sand.u32 %s25, 1
          %s124 = scalar_lea.sflag [#allocation3], %s123
          %s125 = sand.u32 %s25, 1
          %s126 = smul.addr %s125, 64
          %s127 = scalar_lea.vmem [#allocation2], %s126
          %s128 = smul.u32 8, %s15
          %s130 = ssub.s32 1024, 1024
          %131 = vsyncadd %s124, %s130
          %s132 = smul.addr %s128, 128
          %s133 = scalar_lea.hbm %s0, %s132
          %s134 = sshll.u32 %s127, 4
          %s135 = int_to_ptr.vmem [resolvable:$true] %s134
          %140 = dma.hbm_to_vmem [thread:$0]  %s133, 1024, %s135, %s124, 128, 128, 8
        $region24: #{tpu_custom_call.1} parent=19 // pred_fallthru
          _
      $region20: #{tpu_custom_call.1} parent=5 // pred_fallthru
        _
      %p141 = scmp.le.s32.totalorder 1, %s15
      %p142 = scmp.lt.s32.totalorder %s15, 3
      %p143 = pnand %p141, %p142
      %p144 = pneg %p143
      // Predicated region
      $region25: #{tpu_custom_call.1} parent=5 // pred_check
        _
      $region26: #{tpu_custom_call.1} parent=5 // pred_check_branch
        %146 = sbr.rel (%p143) target = $region28
      $region27: #{tpu_custom_call.1} parent=5 // pred_region
        %s147 = ssub.s32 %s15, 1
        %s148 = sand.u32 %s28, 1
        %s149 = scalar_lea.sflag [#allocation3], %s148
        %s150 = sand.u32 %s28, 1
        %s151 = smul.addr %s150, 64
        %s152 = scalar_lea.vmem [#allocation2], %s151
        // Predicated region
        $region29: #{tpu_custom_call.1} parent=27 // pred_check
          %p153 = pneg %p41
        $region30: #{tpu_custom_call.1} parent=27 // pred_check_branch
          %155 = sbr.rel (%p153) target = $region32
        $region31: #{tpu_custom_call.1} parent=27 // pred_region
          %156 = dma.done %s149, 1024
        $region32: #{tpu_custom_call.1} parent=27 // pred_fallthru
          _
        // Predicated region
        $region33: #{tpu_custom_call.1} parent=27 // pred_check
          %p157 = pneg %p62
        $region34: #{tpu_custom_call.1} parent=27 // pred_check_branch
          %159 = sbr.rel (%p157) target = $region36
        $region35: #{tpu_custom_call.1} parent=27 // pred_region
          %160 = dma.done [#allocation6], 512
        $region36: #{tpu_custom_call.1} parent=27 // pred_fallthru
          _
        %s161 = sand.u32 %s28, 1
        %s162 = scalar_lea.sflag [#allocation3], %s161
        %s163 = sand.u32 %s28, 1
        %s164 = smul.addr %s163, 64
        %s165 = scalar_lea.vmem [#allocation2], %s164
        %p166 = pneg %p41
        %p167 = pneg %p38
        %p168 = pneg %p62
        %p169 = pneg %p59
        %p170 = pneg %p88
        %p171 = pneg %p85
        %s172 = sand.u32 %s75, 1
        %s173 = scalar_lea.sflag [#allocation4], %s172
        %s174 = sand.u32 %s75, 1
        %s175 = smul.addr %s174, 8
        %s176 = scalar_lea.vmem [#allocation7], %s175
        %s177 = smul.u32 8, %s20
        %v178 = vld [vmem:[%s152] sm:$0xff]
        %v179 = vld [vmem:[%s152 + $0x8] sm:$0xff]
        %v180 = vld [vmem:[%s152 + $0x10] sm:$0xff]
        %v181 = vld [vmem:[%s152 + $0x18] sm:$0xff]
        %v182 = vld [vmem:[%s152 + $0x20] sm:$0xff]
        %v183 = vld [vmem:[%s152 + $0x28] sm:$0xff]
        %v184 = vld [vmem:[%s152 + $0x30] sm:$0xff]
        %v185 = vld [vmem:[%s152 + $0x38] sm:$0xff]
        %v186 = vld [vmem:[#allocation5] sm:$0xff]
        %v187 = vld [vmem:[#allocation5 + $0x8] sm:$0xff]
        %v188 = vld [vmem:[#allocation5 + $0x10] sm:$0xff]
        %v189 = vld [vmem:[#allocation5 + $0x18] sm:$0xff]
        %vm190 = vcmask 261120
        %v192 = vsel %vm190, %v178, 0
        %v195 = vsel %vm190, %v179, 0
        %v198 = vsel %vm190, %v180, 0
        %v201 = vsel %vm190, %v181, 0
        %v204 = vsel %vm190, %v182, 0
        %v207 = vsel %vm190, %v183, 0
        %v210 = vsel %vm190, %v184, 0
        %v213 = vsel %vm190, %v185, 0
        %215 = vmatprep.subr.mxu0 0.0
        %216 = vmatpush1.msra.mxu0 %v186
        %217 = vmatprep.subr.mxu0 0.0
        %218 = vmatpush1.msra.mxu0 %v187
        %219 = vmatprep.subr.mxu0 0.0
        %220 = vmatpush1.msra.mxu0 %v188
        %221 = vmatprep.subr.mxu0 0.0
        %222 = vmatpush1.msra.mxu0 %v189
        %223 = vmatprep.subr.mxu0 0.0
        %224 = vmatpush1.msra.mxu0 0.0
        %225 = vmatprep.subr.mxu0 0.0
        %226 = vmatpush1.msra.mxu0 0.0
        %227 = vmatprep.subr.mxu0 0.0
        %228 = vmatpush1.msra.mxu0 0.0
        %229 = vmatprep.subr.mxu0 0.0
        %230 = vmatpush1.msra.mxu0 0.0
        %231 = vmatprep.subr.mxu0 0.0
        %232 = vmatpush1.msra.mxu0 0.0
        %233 = vmatprep.subr.mxu0 0.0
        %234 = vmatpush1.msra.mxu0 0.0
        %235 = vmatprep.subr.mxu0 0.0
        %236 = vmatpush1.msra.mxu0 0.0
        %237 = vmatprep.subr.mxu0 0.0
        %238 = vmatpush1.msra.mxu0 0.0
        %239 = vmatprep.subr.mxu0 0.0
        %240 = vmatpush1.msra.mxu0 0.0
        %241 = vmatprep.subr.mxu0 0.0
        %242 = vmatpush1.msra.mxu0 0.0
        %243 = vmatprep.subr.mxu0 0.0
        %244 = vmatpush1.msra.mxu0 0.0
        %245 = vmatprep.subr.mxu0 0.0
        %246 = vmatpush1.msra.mxu0 0.0
        %247 = vmatprep.subr.mxu0 0.0
        %248 = vmatpush1.msra.mxu0 0.0
        %249 = vmatprep.subr.mxu0 0.0
        %250 = vmatpush1.msra.mxu0 0.0
        %251 = vmatprep.subr.mxu0 0.0
        %252 = vmatpush1.msra.mxu0 0.0
        %253 = vmatprep.subr.mxu0 0.0
        %254 = vmatpush1.msra.mxu0 0.0
        %255 = vmatprep.subr.mxu0 0.0
        %256 = vmatpush1.msra.mxu0 0.0
        %257 = vmatprep.subr.mxu0 0.0
        %258 = vmatpush1.msra.mxu0 0.0
        %259 = vmatprep.subr.mxu0 0.0
        %260 = vmatpush1.msra.mxu0 0.0
        %261 = vmatprep.subr.mxu0 0.0
        %262 = vmatpush1.msra.mxu0 0.0
        %263 = vmatprep.subr.mxu0 0.0
        %264 = vmatpush1.msra.mxu0 0.0
        %265 = vmatprep.subr.mxu0 0.0
        %266 = vmatpush1.msra.mxu0 0.0
        %267 = vmatprep.subr.mxu0 0.0
        %268 = vmatpush1.msra.mxu0 0.0
        %269 = vmatprep.subr.mxu0 0.0
        %270 = vmatpush1.msra.mxu0 0.0
        %271 = vmatprep.subr.mxu0 0.0
        %272 = vmatpush1.msra.mxu0 0.0
        %273 = vmatprep.subr.mxu0 0.0
        %274 = vmatpush1.msra.mxu0 0.0
        %275 = vmatprep.subr.mxu0 0.0
        %276 = vmatpush1.msra.mxu0 0.0
        %277 = vmatprep.subr.mxu0 0.0
        %278 = vmatpush1.msra.mxu0 0.0
        %279 = vmatprep.mubr.f32.mxu0 0.0
        %280 = vmatmul.mubr.f32.gmra.mrb[0].mxu0 %v192
        %v281 = vpop.f32.mrb[0].mxu0
        %v282 = vadd.f32 0.0, %v281
        %v283 = vpop.f32.mrb[0].mxu0
        %284 = vmatprep.mubr.f32.mxu0 0.0
        %285 = vmatmul.mubr.f32.gmra.mrb[0].mxu0 %v195
        %v286 = vpop.f32.mrb[0].mxu0
        %v287 = vadd.f32 0.0, %v286
        %v288 = vpop.f32.mrb[0].mxu0
        %289 = vmatprep.mubr.f32.mxu0 0.0
        %290 = vmatmul.mubr.f32.gmra.mrb[0].mxu0 %v198
        %v291 = vpop.f32.mrb[0].mxu0
        %v292 = vadd.f32 0.0, %v291
        %v293 = vpop.f32.mrb[0].mxu0
        %294 = vmatprep.mubr.f32.mxu0 0.0
        %295 = vmatmul.mubr.f32.gmra.mrb[0].mxu0 %v201
        %v296 = vpop.f32.mrb[0].mxu0
        %v297 = vadd.f32 0.0, %v296
        %v298 = vpop.f32.mrb[0].mxu0
        %299 = vmatprep.mubr.f32.mxu0 0.0
        %300 = vmatmul.mubr.f32.gmra.mrb[0].mxu0 %v204
        %v301 = vpop.f32.mrb[0].mxu0
        %v302 = vadd.f32 0.0, %v301
        %v303 = vpop.f32.mrb[0].mxu0
        %304 = vmatprep.mubr.f32.mxu0 0.0
        %305 = vmatmul.mubr.f32.gmra.mrb[0].mxu0 %v207
        %v306 = vpop.f32.mrb[0].mxu0
        %v307 = vadd.f32 0.0, %v306
        %v308 = vpop.f32.mrb[0].mxu0
        %309 = vmatprep.mubr.f32.mxu0 0.0
        %310 = vmatmul.mubr.f32.gmra.mrb[0].mxu0 %v210
        %v311 = vpop.f32.mrb[0].mxu0
        %v312 = vadd.f32 0.0, %v311
        %v313 = vpop.f32.mrb[0].mxu0
        %314 = vmatprep.mubr.f32.mxu0 0.0
        %315 = vmatmul.mubr.f32.gmra.mrb[0].mxu0 %v213
        %v316 = vpop.f32.mrb[0].mxu0
        %v317 = vadd.f32 0.0, %v316
        %v318 = vpop.f32.mrb[0].mxu0
        %319 = vdwg.mxu0
        %321 = vrot.lane.b32.xlu0 %v282, 96
        %v322 = vpop.permute.xlu0 %321
        %v323 = vsel %vm190, %v282, 0
        %v325 = vsel %vm190, %v322, 0
        %327 = vmatprep.subr.mxu0 0.0
        %328 = vmatpush1.xpose.msra.mxu0 %v325
        %329 = vmatprep.subr.mxu0 0.0
        %330 = vmatpush1.xpose.msra.mxu0 0.0
        %331 = vmatprep.subr.mxu0 0.0
        %332 = vmatpush1.xpose.msra.mxu0 0.0
        %333 = vmatprep.subr.mxu0 0.0
        %334 = vmatpush1.xpose.msra.mxu0 0.0
        %335 = vmatprep.subr.mxu0 0.0
        %336 = vmatpush1.xpose.msra.mxu0 0.0
        %337 = vmatprep.subr.mxu0 0.0
        %338 = vmatpush1.xpose.msra.mxu0 0.0
        %339 = vmatprep.subr.mxu0 0.0
        %340 = vmatpush1.xpose.msra.mxu0 0.0
        %341 = vmatprep.subr.mxu0 0.0
        %342 = vmatpush1.xpose.msra.mxu0 0.0
        %343 = vmatprep.subr.mxu0 0.0
        %344 = vmatpush1.xpose.msra.mxu0 0.0
        %345 = vmatprep.subr.mxu0 0.0
        %346 = vmatpush1.xpose.msra.mxu0 0.0
        %347 = vmatprep.subr.mxu0 0.0
        %348 = vmatpush1.xpose.msra.mxu0 0.0
        %349 = vmatprep.subr.mxu0 0.0
        %350 = vmatpush1.xpose.msra.mxu0 0.0
        %351 = vmatprep.subr.mxu0 0.0
        %352 = vmatpush1.xpose.msra.mxu0 0.0
        %353 = vmatprep.subr.mxu0 0.0
        %354 = vmatpush1.xpose.msra.mxu0 0.0
        %355 = vmatprep.subr.mxu0 0.0
        %356 = vmatpush1.xpose.msra.mxu0 0.0
        %357 = vmatprep.subr.mxu0 0.0
        %358 = vmatpush1.xpose.msra.mxu0 0.0
        %359 = vmatprep.subr.mxu0 0.0
        %360 = vmatpush1.xpose.msra.mxu0 0.0
        %361 = vmatprep.subr.mxu0 0.0
        %362 = vmatpush1.xpose.msra.mxu0 0.0
        %363 = vmatprep.subr.mxu0 0.0
        %364 = vmatpush1.xpose.msra.mxu0 0.0
        %365 = vmatprep.subr.mxu0 0.0
        %366 = vmatpush1.xpose.msra.mxu0 0.0
        %367 = vmatprep.subr.mxu0 0.0
        %368 = vmatpush1.xpose.msra.mxu0 0.0
        %369 = vmatprep.subr.mxu0 0.0
        %370 = vmatpush1.xpose.msra.mxu0 0.0
        %371 = vmatprep.subr.mxu0 0.0
        %372 = vmatpush1.xpose.msra.mxu0 0.0
        %373 = vmatprep.subr.mxu0 0.0
        %374 = vmatpush1.xpose.msra.mxu0 0.0
        %375 = vmatprep.subr.mxu0 0.0
        %376 = vmatpush1.xpose.msra.mxu0 0.0
        %377 = vmatprep.subr.mxu0 0.0
        %378 = vmatpush1.xpose.msra.mxu0 0.0
        %379 = vmatprep.subr.mxu0 0.0
        %380 = vmatpush1.xpose.msra.mxu0 0.0
        %381 = vmatprep.subr.mxu0 0.0
        %382 = vmatpush1.xpose.msra.mxu0 0.0
        %383 = vmatprep.subr.mxu0 0.0
        %384 = vmatpush1.xpose.msra.mxu0 0.0
        %385 = vmatprep.subr.mxu0 0.0
        %386 = vmatpush1.xpose.msra.mxu0 0.0
        %387 = vmatprep.subr.mxu0 0.0
        %388 = vmatpush1.xpose.msra.mxu0 0.0
        %389 = vmatprep.subr.mxu0 0.0
        %390 = vmatpush1.xpose.msra.mxu0 0.0
        %391 = vmatprep.mubr.f32.mxu0 0.0
        %392 = vmatmul.mubr.f32.gmra.mrb[0].mxu0 %v323
        %v393 = vpop.f32.mrb[0].mxu0
        %v394 = vadd.f32 0.0, %v393
        %v395 = vpop.f32.mrb[0].mxu0
        %396 = vdwg.mxu0
        %398 = vrot.lane.b32.xlu0 %v287, 96
        %v399 = vpop.permute.xlu0 %398
        %v400 = vsel %vm190, %v287, 0
        %v402 = vsel %vm190, %v399, 0
        %404 = vmatprep.subr.mxu0 0.0
        %405 = vmatpush1.xpose.msra.mxu0 %v402
        %406 = vmatprep.subr.mxu0 0.0
        %407 = vmatpush1.xpose.msra.mxu0 0.0
        %408 = vmatprep.subr.mxu0 0.0
        %409 = vmatpush1.xpose.msra.mxu0 0.0
        %410 = vmatprep.subr.mxu0 0.0
        %411 = vmatpush1.xpose.msra.mxu0 0.0
        %412 = vmatprep.subr.mxu0 0.0
        %413 = vmatpush1.xpose.msra.mxu0 0.0
        %414 = vmatprep.subr.mxu0 0.0
        %415 = vmatpush1.xpose.msra.mxu0 0.0
        %416 = vmatprep.subr.mxu0 0.0
        %417 = vmatpush1.xpose.msra.mxu0 0.0
        %418 = vmatprep.subr.mxu0 0.0
        %419 = vmatpush1.xpose.msra.mxu0 0.0
        %420 = vmatprep.subr.mxu0 0.0
        %421 = vmatpush1.xpose.msra.mxu0 0.0
        %422 = vmatprep.subr.mxu0 0.0
        %423 = vmatpush1.xpose.msra.mxu0 0.0
        %424 = vmatprep.subr.mxu0 0.0
        %425 = vmatpush1.xpose.msra.mxu0 0.0
        %426 = vmatprep.subr.mxu0 0.0
        %427 = vmatpush1.xpose.msra.mxu0 0.0
        %428 = vmatprep.subr.mxu0 0.0
        %429 = vmatpush1.xpose.msra.mxu0 0.0
        %430 = vmatprep.subr.mxu0 0.0
        %431 = vmatpush1.xpose.msra.mxu0 0.0
        %432 = vmatprep.subr.mxu0 0.0
        %433 = vmatpush1.xpose.msra.mxu0 0.0
        %434 = vmatprep.subr.mxu0 0.0
        %435 = vmatpush1.xpose.msra.mxu0 0.0
        %436 = vmatprep.subr.mxu0 0.0
        %437 = vmatpush1.xpose.msra.mxu0 0.0
        %438 = vmatprep.subr.mxu0 0.0
        %439 = vmatpush1.xpose.msra.mxu0 0.0
        %440 = vmatprep.subr.mxu0 0.0
        %441 = vmatpush1.xpose.msra.mxu0 0.0
        %442 = vmatprep.subr.mxu0 0.0
        %443 = vmatpush1.xpose.msra.mxu0 0.0
        %444 = vmatprep.subr.mxu0 0.0
        %445 = vmatpush1.xpose.msra.mxu0 0.0
        %446 = vmatprep.subr.mxu0 0.0
        %447 = vmatpush1.xpose.msra.mxu0 0.0
        %448 = vmatprep.subr.mxu0 0.0
        %449 = vmatpush1.xpose.msra.mxu0 0.0
        %450 = vmatprep.subr.mxu0 0.0
        %451 = vmatpush1.xpose.msra.mxu0 0.0
        %452 = vmatprep.subr.mxu0 0.0
        %453 = vmatpush1.xpose.msra.mxu0 0.0
        %454 = vmatprep.subr.mxu0 0.0
        %455 = vmatpush1.xpose.msra.mxu0 0.0
        %456 = vmatprep.subr.mxu0 0.0
        %457 = vmatpush1.xpose.msra.mxu0 0.0
        %458 = vmatprep.subr.mxu0 0.0
        %459 = vmatpush1.xpose.msra.mxu0 0.0
        %460 = vmatprep.subr.mxu0 0.0
        %461 = vmatpush1.xpose.msra.mxu0 0.0
        %462 = vmatprep.subr.mxu0 0.0
        %463 = vmatpush1.xpose.msra.mxu0 0.0
        %464 = vmatprep.subr.mxu0 0.0
        %465 = vmatpush1.xpose.msra.mxu0 0.0
        %466 = vmatprep.subr.mxu0 0.0
        %467 = vmatpush1.xpose.msra.mxu0 0.0
        %468 = vmatprep.mubr.f32.mxu0 0.0
        %469 = vmatmul.mubr.f32.gmra.mrb[0].mxu0 %v400
        %v470 = vpop.f32.mrb[0].mxu0
        %v471 = vadd.f32 0.0, %v470
        %v472 = vpop.f32.mrb[0].mxu0
        %473 = vdwg.mxu0
        %475 = vrot.lane.b32.xlu0 %v292, 96
        %v476 = vpop.permute.xlu0 %475
        %v477 = vsel %vm190, %v292, 0
        %v479 = vsel %vm190, %v476, 0
        %481 = vmatprep.subr.mxu0 0.0
        %482 = vmatpush1.xpose.msra.mxu0 %v479
        %483 = vmatprep.subr.mxu0 0.0
        %484 = vmatpush1.xpose.msra.mxu0 0.0
        %485 = vmatprep.subr.mxu0 0.0
        %486 = vmatpush1.xpose.msra.mxu0 0.0
        %487 = vmatprep.subr.mxu0 0.0
        %488 = vmatpush1.xpose.msra.mxu0 0.0
        %489 = vmatprep.subr.mxu0 0.0
        %490 = vmatpush1.xpose.msra.mxu0 0.0
        %491 = vmatprep.subr.mxu0 0.0
        %492 = vmatpush1.xpose.msra.mxu0 0.0
        %493 = vmatprep.subr.mxu0 0.0
        %494 = vmatpush1.xpose.msra.mxu0 0.0
        %495 = vmatprep.subr.mxu0 0.0
        %496 = vmatpush1.xpose.msra.mxu0 0.0
        %497 = vmatprep.subr.mxu0 0.0
        %498 = vmatpush1.xpose.msra.mxu0 0.0
        %499 = vmatprep.subr.mxu0 0.0
        %500 = vmatpush1.xpose.msra.mxu0 0.0
        %501 = vmatprep.subr.mxu0 0.0
        %502 = vmatpush1.xpose.msra.mxu0 0.0
        %503 = vmatprep.subr.mxu0 0.0
        %504 = vmatpush1.xpose.msra.mxu0 0.0
        %505 = vmatprep.subr.mxu0 0.0
        %506 = vmatpush1.xpose.msra.mxu0 0.0
        %507 = vmatprep.subr.mxu0 0.0
        %508 = vmatpush1.xpose.msra.mxu0 0.0
        %509 = vmatprep.subr.mxu0 0.0
        %510 = vmatpush1.xpose.msra.mxu0 0.0
        %511 = vmatprep.subr.mxu0 0.0
        %512 = vmatpush1.xpose.msra.mxu0 0.0
        %513 = vmatprep.subr.mxu0 0.0
        %514 = vmatpush1.xpose.msra.mxu0 0.0
        %515 = vmatprep.subr.mxu0 0.0
        %516 = vmatpush1.xpose.msra.mxu0 0.0
        %517 = vmatprep.subr.mxu0 0.0
        %518 = vmatpush1.xpose.msra.mxu0 0.0
        %519 = vmatprep.subr.mxu0 0.0
        %520 = vmatpush1.xpose.msra.mxu0 0.0
        %521 = vmatprep.subr.mxu0 0.0
        %522 = vmatpush1.xpose.msra.mxu0 0.0
        %523 = vmatprep.subr.mxu0 0.0
        %524 = vmatpush1.xpose.msra.mxu0 0.0
        %525 = vmatprep.subr.mxu0 0.0
        %526 = vmatpush1.xpose.msra.mxu0 0.0
        %527 = vmatprep.subr.mxu0 0.0
        %528 = vmatpush1.xpose.msra.mxu0 0.0
        %529 = vmatprep.subr.mxu0 0.0
        %530 = vmatpush1.xpose.msra.mxu0 0.0
        %531 = vmatprep.subr.mxu0 0.0
        %532 = vmatpush1.xpose.msra.mxu0 0.0
        %533 = vmatprep.subr.mxu0 0.0
        %534 = vmatpush1.xpose.msra.mxu0 0.0
        %535 = vmatprep.subr.mxu0 0.0
        %536 = vmatpush1.xpose.msra.mxu0 0.0
        %537 = vmatprep.subr.mxu0 0.0
        %538 = vmatpush1.xpose.msra.mxu0 0.0
        %539 = vmatprep.subr.mxu0 0.0
        %540 = vmatpush1.xpose.msra.mxu0 0.0
        %541 = vmatprep.subr.mxu0 0.0
        %542 = vmatpush1.xpose.msra.mxu0 0.0
        %543 = vmatprep.subr.mxu0 0.0
        %544 = vmatpush1.xpose.msra.mxu0 0.0
        %545 = vmatprep.mubr.f32.mxu0 0.0
        %546 = vmatmul.mubr.f32.gmra.mrb[0].mxu0 %v477
        %v547 = vpop.f32.mrb[0].mxu0
        %v548 = vadd.f32 0.0, %v547
        %v549 = vpop.f32.mrb[0].mxu0
        %550 = vdwg.mxu0
        %552 = vrot.lane.b32.xlu0 %v297, 96
        %v553 = vpop.permute.xlu0 %552
        %v554 = vsel %vm190, %v297, 0
        %v556 = vsel %vm190, %v553, 0
        %558 = vmatprep.subr.mxu0 0.0
        %559 = vmatpush1.xpose.msra.mxu0 %v556
        %560 = vmatprep.subr.mxu0 0.0
        %561 = vmatpush1.xpose.msra.mxu0 0.0
        %562 = vmatprep.subr.mxu0 0.0
        %563 = vmatpush1.xpose.msra.mxu0 0.0
        %564 = vmatprep.subr.mxu0 0.0
        %565 = vmatpush1.xpose.msra.mxu0 0.0
        %566 = vmatprep.subr.mxu0 0.0
        %567 = vmatpush1.xpose.msra.mxu0 0.0
        %568 = vmatprep.subr.mxu0 0.0
        %569 = vmatpush1.xpose.msra.mxu0 0.0
        %570 = vmatprep.subr.mxu0 0.0
        %571 = vmatpush1.xpose.msra.mxu0 0.0
        %572 = vmatprep.subr.mxu0 0.0
        %573 = vmatpush1.xpose.msra.mxu0 0.0
        %574 = vmatprep.subr.mxu0 0.0
        %575 = vmatpush1.xpose.msra.mxu0 0.0
        %576 = vmatprep.subr.mxu0 0.0
        %577 = vmatpush1.xpose.msra.mxu0 0.0
        %578 = vmatprep.subr.mxu0 0.0
        %579 = vmatpush1.xpose.msra.mxu0 0.0
        %580 = vmatprep.subr.mxu0 0.0
        %581 = vmatpush1.xpose.msra.mxu0 0.0
        %582 = vmatprep.subr.mxu0 0.0
        %583 = vmatpush1.xpose.msra.mxu0 0.0
        %584 = vmatprep.subr.mxu0 0.0
        %585 = vmatpush1.xpose.msra.mxu0 0.0
        %586 = vmatprep.subr.mxu0 0.0
        %587 = vmatpush1.xpose.msra.mxu0 0.0
        %588 = vmatprep.subr.mxu0 0.0
        %589 = vmatpush1.xpose.msra.mxu0 0.0
        %590 = vmatprep.subr.mxu0 0.0
        %591 = vmatpush1.xpose.msra.mxu0 0.0
        %592 = vmatprep.subr.mxu0 0.0
        %593 = vmatpush1.xpose.msra.mxu0 0.0
        %594 = vmatprep.subr.mxu0 0.0
        %595 = vmatpush1.xpose.msra.mxu0 0.0
        %596 = vmatprep.subr.mxu0 0.0
        %597 = vmatpush1.xpose.msra.mxu0 0.0
        %598 = vmatprep.subr.mxu0 0.0
        %599 = vmatpush1.xpose.msra.mxu0 0.0
        %600 = vmatprep.subr.mxu0 0.0
        %601 = vmatpush1.xpose.msra.mxu0 0.0
        %602 = vmatprep.subr.mxu0 0.0
        %603 = vmatpush1.xpose.msra.mxu0 0.0
        %604 = vmatprep.subr.mxu0 0.0
        %605 = vmatpush1.xpose.msra.mxu0 0.0
        %606 = vmatprep.subr.mxu0 0.0
        %607 = vmatpush1.xpose.msra.mxu0 0.0
        %608 = vmatprep.subr.mxu0 0.0
        %609 = vmatpush1.xpose.msra.mxu0 0.0
        %610 = vmatprep.subr.mxu0 0.0
        %611 = vmatpush1.xpose.msra.mxu0 0.0
        %612 = vmatprep.subr.mxu0 0.0
        %613 = vmatpush1.xpose.msra.mxu0 0.0
        %614 = vmatprep.subr.mxu0 0.0
        %615 = vmatpush1.xpose.msra.mxu0 0.0
        %616 = vmatprep.subr.mxu0 0.0
        %617 = vmatpush1.xpose.msra.mxu0 0.0
        %618 = vmatprep.subr.mxu0 0.0
        %619 = vmatpush1.xpose.msra.mxu0 0.0
        %620 = vmatprep.subr.mxu0 0.0
        %621 = vmatpush1.xpose.msra.mxu0 0.0
        %622 = vmatprep.mubr.f32.mxu0 0.0
        %623 = vmatmul.mubr.f32.gmra.mrb[0].mxu0 %v554
        %v624 = vpop.f32.mrb[0].mxu0
        %v625 = vadd.f32 0.0, %v624
        %v626 = vpop.f32.mrb[0].mxu0
        %627 = vdwg.mxu0
        %629 = vrot.lane.b32.xlu0 %v302, 96
        %v630 = vpop.permute.xlu0 %629
        %v631 = vsel %vm190, %v302, 0
        %v633 = vsel %vm190, %v630, 0
        %635 = vmatprep.subr.mxu0 0.0
        %636 = vmatpush1.xpose.msra.mxu0 %v633
        %637 = vmatprep.subr.mxu0 0.0
        %638 = vmatpush1.xpose.msra.mxu0 0.0
        %639 = vmatprep.subr.mxu0 0.0
        %640 = vmatpush1.xpose.msra.mxu0 0.0
        %641 = vmatprep.subr.mxu0 0.0
        %642 = vmatpush1.xpose.msra.mxu0 0.0
        %643 = vmatprep.subr.mxu0 0.0
        %644 = vmatpush1.xpose.msra.mxu0 0.0
        %645 = vmatprep.subr.mxu0 0.0
        %646 = vmatpush1.xpose.msra.mxu0 0.0
        %647 = vmatprep.subr.mxu0 0.0
        %648 = vmatpush1.xpose.msra.mxu0 0.0
        %649 = vmatprep.subr.mxu0 0.0
        %650 = vmatpush1.xpose.msra.mxu0 0.0
        %651 = vmatprep.subr.mxu0 0.0
        %652 = vmatpush1.xpose.msra.mxu0 0.0
        %653 = vmatprep.subr.mxu0 0.0
        %654 = vmatpush1.xpose.msra.mxu0 0.0
        %655 = vmatprep.subr.mxu0 0.0
        %656 = vmatpush1.xpose.msra.mxu0 0.0
        %657 = vmatprep.subr.mxu0 0.0
        %658 = vmatpush1.xpose.msra.mxu0 0.0
        %659 = vmatprep.subr.mxu0 0.0
        %660 = vmatpush1.xpose.msra.mxu0 0.0
        %661 = vmatprep.subr.mxu0 0.0
        %662 = vmatpush1.xpose.msra.mxu0 0.0
        %663 = vmatprep.subr.mxu0 0.0
        %664 = vmatpush1.xpose.msra.mxu0 0.0
        %665 = vmatprep.subr.mxu0 0.0
        %666 = vmatpush1.xpose.msra.mxu0 0.0
        %667 = vmatprep.subr.mxu0 0.0
        %668 = vmatpush1.xpose.msra.mxu0 0.0
        %669 = vmatprep.subr.mxu0 0.0
        %670 = vmatpush1.xpose.msra.mxu0 0.0
        %671 = vmatprep.subr.mxu0 0.0
        %672 = vmatpush1.xpose.msra.mxu0 0.0
        %673 = vmatprep.subr.mxu0 0.0
        %674 = vmatpush1.xpose.msra.mxu0 0.0
        %675 = vmatprep.subr.mxu0 0.0
        %676 = vmatpush1.xpose.msra.mxu0 0.0
        %677 = vmatprep.subr.mxu0 0.0
        %678 = vmatpush1.xpose.msra.mxu0 0.0
        %679 = vmatprep.subr.mxu0 0.0
        %680 = vmatpush1.xpose.msra.mxu0 0.0
        %681 = vmatprep.subr.mxu0 0.0
        %682 = vmatpush1.xpose.msra.mxu0 0.0
        %683 = vmatprep.subr.mxu0 0.0
        %684 = vmatpush1.xpose.msra.mxu0 0.0
        %685 = vmatprep.subr.mxu0 0.0
        %686 = vmatpush1.xpose.msra.mxu0 0.0
        %687 = vmatprep.subr.mxu0 0.0
        %688 = vmatpush1.xpose.msra.mxu0 0.0
        %689 = vmatprep.subr.mxu0 0.0
        %690 = vmatpush1.xpose.msra.mxu0 0.0
        %691 = vmatprep.subr.mxu0 0.0
        %692 = vmatpush1.xpose.msra.mxu0 0.0
        %693 = vmatprep.subr.mxu0 0.0
        %694 = vmatpush1.xpose.msra.mxu0 0.0
        %695 = vmatprep.subr.mxu0 0.0
        %696 = vmatpush1.xpose.msra.mxu0 0.0
        %697 = vmatprep.subr.mxu0 0.0
        %698 = vmatpush1.xpose.msra.mxu0 0.0
        %699 = vmatprep.mubr.f32.mxu0 0.0
        %700 = vmatmul.mubr.f32.gmra.mrb[0].mxu0 %v631
        %v701 = vpop.f32.mrb[0].mxu0
        %v702 = vadd.f32 0.0, %v701
        %v703 = vpop.f32.mrb[0].mxu0
        %704 = vdwg.mxu0
        %706 = vrot.lane.b32.xlu0 %v307, 96
        %v707 = vpop.permute.xlu0 %706
        %v708 = vsel %vm190, %v307, 0
        %v710 = vsel %vm190, %v707, 0
        %712 = vmatprep.subr.mxu0 0.0
        %713 = vmatpush1.xpose.msra.mxu0 %v710
        %714 = vmatprep.subr.mxu0 0.0
        %715 = vmatpush1.xpose.msra.mxu0 0.0
        %716 = vmatprep.subr.mxu0 0.0
        %717 = vmatpush1.xpose.msra.mxu0 0.0
        %718 = vmatprep.subr.mxu0 0.0
        %719 = vmatpush1.xpose.msra.mxu0 0.0
        %720 = vmatprep.subr.mxu0 0.0
        %721 = vmatpush1.xpose.msra.mxu0 0.0
        %722 = vmatprep.subr.mxu0 0.0
        %723 = vmatpush1.xpose.msra.mxu0 0.0
        %724 = vmatprep.subr.mxu0 0.0
        %725 = vmatpush1.xpose.msra.mxu0 0.0
        %726 = vmatprep.subr.mxu0 0.0
        %727 = vmatpush1.xpose.msra.mxu0 0.0
        %728 = vmatprep.subr.mxu0 0.0
        %729 = vmatpush1.xpose.msra.mxu0 0.0
        %730 = vmatprep.subr.mxu0 0.0
        %731 = vmatpush1.xpose.msra.mxu0 0.0
        %732 = vmatprep.subr.mxu0 0.0
        %733 = vmatpush1.xpose.msra.mxu0 0.0
        %734 = vmatprep.subr.mxu0 0.0
        %735 = vmatpush1.xpose.msra.mxu0 0.0
        %736 = vmatprep.subr.mxu0 0.0
        %737 = vmatpush1.xpose.msra.mxu0 0.0
        %738 = vmatprep.subr.mxu0 0.0
        %739 = vmatpush1.xpose.msra.mxu0 0.0
        %740 = vmatprep.subr.mxu0 0.0
        %741 = vmatpush1.xpose.msra.mxu0 0.0
        %742 = vmatprep.subr.mxu0 0.0
        %743 = vmatpush1.xpose.msra.mxu0 0.0
        %744 = vmatprep.subr.mxu0 0.0
        %745 = vmatpush1.xpose.msra.mxu0 0.0
        %746 = vmatprep.subr.mxu0 0.0
        %747 = vmatpush1.xpose.msra.mxu0 0.0
        %748 = vmatprep.subr.mxu0 0.0
        %749 = vmatpush1.xpose.msra.mxu0 0.0
        %750 = vmatprep.subr.mxu0 0.0
        %751 = vmatpush1.xpose.msra.mxu0 0.0
        %752 = vmatprep.subr.mxu0 0.0
        %753 = vmatpush1.xpose.msra.mxu0 0.0
        %754 = vmatprep.subr.mxu0 0.0
        %755 = vmatpush1.xpose.msra.mxu0 0.0
        %756 = vmatprep.subr.mxu0 0.0
        %757 = vmatpush1.xpose.msra.mxu0 0.0
        %758 = vmatprep.subr.mxu0 0.0
        %759 = vmatpush1.xpose.msra.mxu0 0.0
        %760 = vmatprep.subr.mxu0 0.0
        %761 = vmatpush1.xpose.msra.mxu0 0.0
        %762 = vmatprep.subr.mxu0 0.0
        %763 = vmatpush1.xpose.msra.mxu0 0.0
        %764 = vmatprep.subr.mxu0 0.0
        %765 = vmatpush1.xpose.msra.mxu0 0.0
        %766 = vmatprep.subr.mxu0 0.0
        %767 = vmatpush1.xpose.msra.mxu0 0.0
        %768 = vmatprep.subr.mxu0 0.0
        %769 = vmatpush1.xpose.msra.mxu0 0.0
        %770 = vmatprep.subr.mxu0 0.0
        %771 = vmatpush1.xpose.msra.mxu0 0.0
        %772 = vmatprep.subr.mxu0 0.0
        %773 = vmatpush1.xpose.msra.mxu0 0.0
        %774 = vmatprep.subr.mxu0 0.0
        %775 = vmatpush1.xpose.msra.mxu0 0.0
        %776 = vmatprep.mubr.f32.mxu0 0.0
        %777 = vmatmul.mubr.f32.gmra.mrb[0].mxu0 %v708
        %v778 = vpop.f32.mrb[0].mxu0
        %v779 = vadd.f32 0.0, %v778
        %v780 = vpop.f32.mrb[0].mxu0
        %781 = vdwg.mxu0
        %783 = vrot.lane.b32.xlu0 %v312, 96
        %v784 = vpop.permute.xlu0 %783
        %v785 = vsel %vm190, %v312, 0
        %v787 = vsel %vm190, %v784, 0
        %789 = vmatprep.subr.mxu0 0.0
        %790 = vmatpush1.xpose.msra.mxu0 %v787
        %791 = vmatprep.subr.mxu0 0.0
        %792 = vmatpush1.xpose.msra.mxu0 0.0
        %793 = vmatprep.subr.mxu0 0.0
        %794 = vmatpush1.xpose.msra.mxu0 0.0
        %795 = vmatprep.subr.mxu0 0.0
        %796 = vmatpush1.xpose.msra.mxu0 0.0
        %797 = vmatprep.subr.mxu0 0.0
        %798 = vmatpush1.xpose.msra.mxu0 0.0
        %799 = vmatprep.subr.mxu0 0.0
        %800 = vmatpush1.xpose.msra.mxu0 0.0
        %801 = vmatprep.subr.mxu0 0.0
        %802 = vmatpush1.xpose.msra.mxu0 0.0
        %803 = vmatprep.subr.mxu0 0.0
        %804 = vmatpush1.xpose.msra.mxu0 0.0
        %805 = vmatprep.subr.mxu0 0.0
        %806 = vmatpush1.xpose.msra.mxu0 0.0
        %807 = vmatprep.subr.mxu0 0.0
        %808 = vmatpush1.xpose.msra.mxu0 0.0
        %809 = vmatprep.subr.mxu0 0.0
        %810 = vmatpush1.xpose.msra.mxu0 0.0
        %811 = vmatprep.subr.mxu0 0.0
        %812 = vmatpush1.xpose.msra.mxu0 0.0
        %813 = vmatprep.subr.mxu0 0.0
        %814 = vmatpush1.xpose.msra.mxu0 0.0
        %815 = vmatprep.subr.mxu0 0.0
        %816 = vmatpush1.xpose.msra.mxu0 0.0
        %817 = vmatprep.subr.mxu0 0.0
        %818 = vmatpush1.xpose.msra.mxu0 0.0
        %819 = vmatprep.subr.mxu0 0.0
        %820 = vmatpush1.xpose.msra.mxu0 0.0
        %821 = vmatprep.subr.mxu0 0.0
        %822 = vmatpush1.xpose.msra.mxu0 0.0
        %823 = vmatprep.subr.mxu0 0.0
        %824 = vmatpush1.xpose.msra.mxu0 0.0
        %825 = vmatprep.subr.mxu0 0.0
        %826 = vmatpush1.xpose.msra.mxu0 0.0
        %827 = vmatprep.subr.mxu0 0.0
        %828 = vmatpush1.xpose.msra.mxu0 0.0
        %829 = vmatprep.subr.mxu0 0.0
        %830 = vmatpush1.xpose.msra.mxu0 0.0
        %831 = vmatprep.subr.mxu0 0.0
        %832 = vmatpush1.xpose.msra.mxu0 0.0
        %833 = vmatprep.subr.mxu0 0.0
        %834 = vmatpush1.xpose.msra.mxu0 0.0
        %835 = vmatprep.subr.mxu0 0.0
        %836 = vmatpush1.xpose.msra.mxu0 0.0
        %837 = vmatprep.subr.mxu0 0.0
        %838 = vmatpush1.xpose.msra.mxu0 0.0
        %839 = vmatprep.subr.mxu0 0.0
        %840 = vmatpush1.xpose.msra.mxu0 0.0
        %841 = vmatprep.subr.mxu0 0.0
        %842 = vmatpush1.xpose.msra.mxu0 0.0
        %843 = vmatprep.subr.mxu0 0.0
        %844 = vmatpush1.xpose.msra.mxu0 0.0
        %845 = vmatprep.subr.mxu0 0.0
        %846 = vmatpush1.xpose.msra.mxu0 0.0
        %847 = vmatprep.subr.mxu0 0.0
        %848 = vmatpush1.xpose.msra.mxu0 0.0
        %849 = vmatprep.subr.mxu0 0.0
        %850 = vmatpush1.xpose.msra.mxu0 0.0
        %851 = vmatprep.subr.mxu0 0.0
        %852 = vmatpush1.xpose.msra.mxu0 0.0
        %853 = vmatprep.mubr.f32.mxu0 0.0
        %854 = vmatmul.mubr.f32.gmra.mrb[0].mxu0 %v785
        %v855 = vpop.f32.mrb[0].mxu0
        %v856 = vadd.f32 0.0, %v855
        %v857 = vpop.f32.mrb[0].mxu0
        %858 = vdwg.mxu0
        %860 = vrot.lane.b32.xlu0 %v317, 96
        %v861 = vpop.permute.xlu0 %860
        %v862 = vsel %vm190, %v317, 0
        %v864 = vsel %vm190, %v861, 0
        %866 = vmatprep.subr.mxu0 0.0
        %867 = vmatpush1.xpose.msra.mxu0 %v864
        %868 = vmatprep.subr.mxu0 0.0
        %869 = vmatpush1.xpose.msra.mxu0 0.0
        %870 = vmatprep.subr.mxu0 0.0
        %871 = vmatpush1.xpose.msra.mxu0 0.0
        %872 = vmatprep.subr.mxu0 0.0
        %873 = vmatpush1.xpose.msra.mxu0 0.0
        %874 = vmatprep.subr.mxu0 0.0
        %875 = vmatpush1.xpose.msra.mxu0 0.0
        %876 = vmatprep.subr.mxu0 0.0
        %877 = vmatpush1.xpose.msra.mxu0 0.0
        %878 = vmatprep.subr.mxu0 0.0
        %879 = vmatpush1.xpose.msra.mxu0 0.0
        %880 = vmatprep.subr.mxu0 0.0
        %881 = vmatpush1.xpose.msra.mxu0 0.0
        %882 = vmatprep.subr.mxu0 0.0
        %883 = vmatpush1.xpose.msra.mxu0 0.0
        %884 = vmatprep.subr.mxu0 0.0
        %885 = vmatpush1.xpose.msra.mxu0 0.0
        %886 = vmatprep.subr.mxu0 0.0
        %887 = vmatpush1.xpose.msra.mxu0 0.0
        %888 = vmatprep.subr.mxu0 0.0
        %889 = vmatpush1.xpose.msra.mxu0 0.0
        %890 = vmatprep.subr.mxu0 0.0
        %891 = vmatpush1.xpose.msra.mxu0 0.0
        %892 = vmatprep.subr.mxu0 0.0
        %893 = vmatpush1.xpose.msra.mxu0 0.0
        %894 = vmatprep.subr.mxu0 0.0
        %895 = vmatpush1.xpose.msra.mxu0 0.0
        %896 = vmatprep.subr.mxu0 0.0
        %897 = vmatpush1.xpose.msra.mxu0 0.0
        %898 = vmatprep.subr.mxu0 0.0
        %899 = vmatpush1.xpose.msra.mxu0 0.0
        %900 = vmatprep.subr.mxu0 0.0
        %901 = vmatpush1.xpose.msra.mxu0 0.0
        %902 = vmatprep.subr.mxu0 0.0
        %903 = vmatpush1.xpose.msra.mxu0 0.0
        %904 = vmatprep.subr.mxu0 0.0
        %905 = vmatpush1.xpose.msra.mxu0 0.0
        %906 = vmatprep.subr.mxu0 0.0
        %907 = vmatpush1.xpose.msra.mxu0 0.0
        %908 = vmatprep.subr.mxu0 0.0
        %909 = vmatpush1.xpose.msra.mxu0 0.0
        %910 = vmatprep.subr.mxu0 0.0
        %911 = vmatpush1.xpose.msra.mxu0 0.0
        %912 = vmatprep.subr.mxu0 0.0
        %913 = vmatpush1.xpose.msra.mxu0 0.0
        %914 = vmatprep.subr.mxu0 0.0
        %915 = vmatpush1.xpose.msra.mxu0 0.0
        %916 = vmatprep.subr.mxu0 0.0
        %917 = vmatpush1.xpose.msra.mxu0 0.0
        %918 = vmatprep.subr.mxu0 0.0
        %919 = vmatpush1.xpose.msra.mxu0 0.0
        %920 = vmatprep.subr.mxu0 0.0
        %921 = vmatpush1.xpose.msra.mxu0 0.0
        %922 = vmatprep.subr.mxu0 0.0
        %923 = vmatpush1.xpose.msra.mxu0 0.0
        %924 = vmatprep.subr.mxu0 0.0
        %925 = vmatpush1.xpose.msra.mxu0 0.0
        %926 = vmatprep.subr.mxu0 0.0
        %927 = vmatpush1.xpose.msra.mxu0 0.0
        %928 = vmatprep.subr.mxu0 0.0
        %929 = vmatpush1.xpose.msra.mxu0 0.0
        %930 = vmatprep.mubr.f32.mxu0 0.0
        %931 = vmatmul.mubr.f32.gmra.mrb[0].mxu0 %v862
        %v932 = vpop.f32.mrb[0].mxu0
        %v933 = vadd.f32 0.0, %v932
        %v934 = vpop.f32.mrb[0].mxu0
        %935 = vdwg.mxu0
        %v936 = vmul.f32 %v394, 0.17677669
        %v937 = vmul.f32 %v471, 0.17677669
        %v938 = vmul.f32 %v548, 0.17677669
        %v939 = vmul.f32 %v625, 0.17677669
        %v940 = vmul.f32 %v702, 0.17677669
        %v941 = vmul.f32 %v779, 0.17677669
        %v942 = vmul.f32 %v856, 0.17677669
        %v943 = vmul.f32 %v933, 0.17677669
        %vm944 = vcmask 64512
        %v945 = vsel %vm944, %v936, -inf
        %946 = vmax.xlane.f32.xlu0 %v945
        %v947 = vpop.xlane.xlu0 %946
        %v948 = vsel %vm944, %v937, -inf
        %949 = vmax.xlane.f32.xlu0 %v948
        %v950 = vpop.xlane.xlu0 %949
        %v951 = vsel %vm944, %v938, -inf
        %952 = vmax.xlane.f32.xlu0 %v951
        %v953 = vpop.xlane.xlu0 %952
        %v954 = vsel %vm944, %v939, -inf
        %955 = vmax.xlane.f32.xlu0 %v954
        %v956 = vpop.xlane.xlu0 %955
        %v957 = vsel %vm944, %v940, -inf
        %958 = vmax.xlane.f32.xlu0 %v957
        %v959 = vpop.xlane.xlu0 %958
        %v960 = vsel %vm944, %v941, -inf
        %961 = vmax.xlane.f32.xlu0 %v960
        %v962 = vpop.xlane.xlu0 %961
        %v963 = vsel %vm944, %v942, -inf
        %964 = vmax.xlane.f32.xlu0 %v963
        %v965 = vpop.xlane.xlu0 %964
        %v966 = vsel %vm944, %v943, -inf
        %967 = vmax.xlane.f32.xlu0 %v966
        %v968 = vpop.xlane.xlu0 %967
        %v969 = vsub.f32 %v936, %v947
        %v970 = vsub.f32 %v937, %v950
        %v971 = vsub.f32 %v938, %v953
        %v972 = vsub.f32 %v939, %v956
        %v973 = vsub.f32 %v940, %v959
        %v974 = vsub.f32 %v941, %v962
        %v975 = vsub.f32 %v942, %v965
        %v976 = vsub.f32 %v943, %v968
        %v977 = vmul.f32 %v969, 1.442695
        %v978 = vpow.pop %v977
        %v979 = vmul.f32 %v970, 1.442695
        %v980 = vpow.pop %v979
        %v981 = vmul.f32 %v971, 1.442695
        %v982 = vpow.pop %v981
        %v983 = vmul.f32 %v972, 1.442695
        %v984 = vpow.pop %v983
        %v985 = vmul.f32 %v973, 1.442695
        %v986 = vpow.pop %v985
        %v987 = vmul.f32 %v974, 1.442695
        %v988 = vpow.pop %v987
        %v989 = vmul.f32 %v975, 1.442695
        %v990 = vpow.pop %v989
        %v991 = vmul.f32 %v976, 1.442695
        %v992 = vpow.pop %v991
        %v993 = vsel %vm944, %v978, 0.0
        %994 = vadd.xlane.f32.xlu0 %v993
        %v995 = vpop.xlane.xlu0 %994
        %v996 = vsel %vm944, %v980, 0.0
        %997 = vadd.xlane.f32.xlu0 %v996
        %v998 = vpop.xlane.xlu0 %997
        %v999 = vsel %vm944, %v982, 0.0
        %1000 = vadd.xlane.f32.xlu0 %v999
        %v1001 = vpop.xlane.xlu0 %1000
        %v1002 = vsel %vm944, %v984, 0.0
        %1003 = vadd.xlane.f32.xlu0 %v1002
        %v1004 = vpop.xlane.xlu0 %1003
        %v1005 = vsel %vm944, %v986, 0.0
        %1006 = vadd.xlane.f32.xlu0 %v1005
        %v1007 = vpop.xlane.xlu0 %1006
        %v1008 = vsel %vm944, %v988, 0.0
        %1009 = vadd.xlane.f32.xlu0 %v1008
        %v1010 = vpop.xlane.xlu0 %1009
        %v1011 = vsel %vm944, %v990, 0.0
        %1012 = vadd.xlane.f32.xlu0 %v1011
        %v1013 = vpop.xlane.xlu0 %1012
        %v1014 = vsel %vm944, %v992, 0.0
        %1015 = vadd.xlane.f32.xlu0 %v1014
        %v1016 = vpop.xlane.xlu0 %1015
        %v1017 = vrcp.pop %v995
        %v1018 = vrcp.pop %v998
        %v1019 = vrcp.pop %v1001
        %v1020 = vrcp.pop %v1004
        %v1021 = vrcp.pop %v1007
        %v1022 = vrcp.pop %v1010
        %v1023 = vrcp.pop %v1013
        %v1024 = vrcp.pop %v1016
        %v1025 = vmul.f32 %v978, %v1017
        %v1026 = vmul.f32 %v980, %v1018
        %v1027 = vmul.f32 %v982, %v1019
        %v1028 = vmul.f32 %v984, %v1020
        %v1029 = vmul.f32 %v986, %v1021
        %v1030 = vmul.f32 %v988, %v1022
        %v1031 = vmul.f32 %v990, %v1023
        %v1032 = vmul.f32 %v992, %v1024
        %v1033 = vsel %vm944, %v1025, 0.0
        %v1034 = vrot.slane %v1033, 4
        %v1035 = vadd.f32 %v1033, %v1034
        %v1036 = vrot.slane %v1035, 2
        %v1037 = vadd.f32 %v1035, %v1036
        %v1038 = vrot.slane %v1037, 1
        %v1039 = vadd.f32 %v1037, %v1038
        %v1040 = vsel %vm944, %v1026, 0.0
        %v1041 = vrot.slane %v1040, 4
        %v1042 = vadd.f32 %v1040, %v1041
        %v1043 = vrot.slane %v1042, 2
        %v1044 = vadd.f32 %v1042, %v1043
        %v1045 = vrot.slane %v1044, 1
        %v1046 = vadd.f32 %v1044, %v1045
        %v1047 = vsel %vm944, %v1027, 0.0
        %v1048 = vrot.slane %v1047, 4
        %v1049 = vadd.f32 %v1047, %v1048
        %v1050 = vrot.slane %v1049, 2
        %v1051 = vadd.f32 %v1049, %v1050
        %v1052 = vrot.slane %v1051, 1
        %v1053 = vadd.f32 %v1051, %v1052
        %v1054 = vsel %vm944, %v1028, 0.0
        %v1055 = vrot.slane %v1054, 4
        %v1056 = vadd.f32 %v1054, %v1055
        %v1057 = vrot.slane %v1056, 2
        %v1058 = vadd.f32 %v1056, %v1057
        %v1059 = vrot.slane %v1058, 1
        %v1060 = vadd.f32 %v1058, %v1059
        %v1061 = vsel %vm944, %v1029, 0.0
        %v1062 = vrot.slane %v1061, 4
        %v1063 = vadd.f32 %v1061, %v1062
        %v1064 = vrot.slane %v1063, 2
        %v1065 = vadd.f32 %v1063, %v1064
        %v1066 = vrot.slane %v1065, 1
        %v1067 = vadd.f32 %v1065, %v1066
        %v1068 = vsel %vm944, %v1030, 0.0
        %v1069 = vrot.slane %v1068, 4
        %v1070 = vadd.f32 %v1068, %v1069
        %v1071 = vrot.slane %v1070, 2
        %v1072 = vadd.f32 %v1070, %v1071
        %v1073 = vrot.slane %v1072, 1
        %v1074 = vadd.f32 %v1072, %v1073
        %v1075 = vsel %vm944, %v1031, 0.0
        %v1076 = vrot.slane %v1075, 4
        %v1077 = vadd.f32 %v1075, %v1076
        %v1078 = vrot.slane %v1077, 2
        %v1079 = vadd.f32 %v1077, %v1078
        %v1080 = vrot.slane %v1079, 1
        %v1081 = vadd.f32 %v1079, %v1080
        %v1082 = vsel %vm944, %v1032, 0.0
        %v1083 = vrot.slane %v1082, 4
        %v1084 = vadd.f32 %v1082, %v1083
        %v1085 = vrot.slane %v1084, 2
        %v1086 = vadd.f32 %v1084, %v1085
        %v1087 = vrot.slane %v1086, 1
        %v1088 = vadd.f32 %v1086, %v1087
        %v1089 = vmul.f32 %v1039, 0.125
        %v1090 = vmul.f32 %v1046, 0.125
        %v1091 = vmul.f32 %v1053, 0.125
        %v1092 = vmul.f32 %v1060, 0.125
        %v1093 = vmul.f32 %v1067, 0.125
        %v1094 = vmul.f32 %v1074, 0.125
        %v1095 = vmul.f32 %v1081, 0.125
        %v1096 = vmul.f32 %v1088, 0.125
        %1098 = vbcast.lane.b32.xlu0 %v1089, 256
        %v1099 = vpop.permute.xlu0 %1098
        %1101 = vbcast.lane.b32.xlu0 %v1090, 256
        %v1102 = vpop.permute.xlu0 %1101
        %1104 = vbcast.lane.b32.xlu0 %v1091, 256
        %v1105 = vpop.permute.xlu0 %1104
        %1107 = vbcast.lane.b32.xlu0 %v1092, 256
        %v1108 = vpop.permute.xlu0 %1107
        %1110 = vbcast.lane.b32.xlu0 %v1093, 256
        %v1111 = vpop.permute.xlu0 %1110
        %1113 = vbcast.lane.b32.xlu0 %v1094, 256
        %v1114 = vpop.permute.xlu0 %1113
        %1116 = vbcast.lane.b32.xlu0 %v1095, 256
        %v1117 = vpop.permute.xlu0 %1116
        %1119 = vbcast.lane.b32.xlu0 %v1096, 256
        %v1120 = vpop.permute.xlu0 %1119
        %v1121 = vmul.f32 %v1099, %v178
        %v1122 = vmul.f32 %v1102, %v179
        %v1123 = vmul.f32 %v1105, %v180
        %v1124 = vmul.f32 %v1108, %v181
        %v1125 = vmul.f32 %v1111, %v182
        %v1126 = vmul.f32 %v1114, %v183
        %v1127 = vmul.f32 %v1117, %v184
        %v1128 = vmul.f32 %v1120, %v185
        %v1129 = vsel %vm190, %v1121, 0.0
        %v1130 = vrot.slane %v1129, 4
        %v1131 = vadd.f32 %v1129, %v1130
        %v1132 = vrot.slane %v1131, 2
        %v1133 = vadd.f32 %v1131, %v1132
        %v1134 = vrot.slane %v1133, 1
        %v1135 = vadd.f32 %v1133, %v1134
        %v1136 = vsel %vm190, %v1122, 0.0
        %v1137 = vrot.slane %v1136, 4
        %v1138 = vadd.f32 %v1136, %v1137
        %v1139 = vrot.slane %v1138, 2
        %v1140 = vadd.f32 %v1138, %v1139
        %v1141 = vrot.slane %v1140, 1
        %v1142 = vadd.f32 %v1140, %v1141
        %v1143 = vsel %vm190, %v1123, 0.0
        %v1144 = vrot.slane %v1143, 4
        %v1145 = vadd.f32 %v1143, %v1144
        %v1146 = vrot.slane %v1145, 2
        %v1147 = vadd.f32 %v1145, %v1146
        %v1148 = vrot.slane %v1147, 1
        %v1149 = vadd.f32 %v1147, %v1148
        %v1150 = vsel %vm190, %v1124, 0.0
        %v1151 = vrot.slane %v1150, 4
        %v1152 = vadd.f32 %v1150, %v1151
        %v1153 = vrot.slane %v1152, 2
        %v1154 = vadd.f32 %v1152, %v1153
        %v1155 = vrot.slane %v1154, 1
        %v1156 = vadd.f32 %v1154, %v1155
        %v1157 = vsel %vm190, %v1125, 0.0
        %v1158 = vrot.slane %v1157, 4
        %v1159 = vadd.f32 %v1157, %v1158
        %v1160 = vrot.slane %v1159, 2
        %v1161 = vadd.f32 %v1159, %v1160
        %v1162 = vrot.slane %v1161, 1
        %v1163 = vadd.f32 %v1161, %v1162
        %v1164 = vsel %vm190, %v1126, 0.0
        %v1165 = vrot.slane %v1164, 4
        %v1166 = vadd.f32 %v1164, %v1165
        %v1167 = vrot.slane %v1166, 2
        %v1168 = vadd.f32 %v1166, %v1167
        %v1169 = vrot.slane %v1168, 1
        %v1170 = vadd.f32 %v1168, %v1169
        %v1171 = vsel %vm190, %v1127, 0.0
        %v1172 = vrot.slane %v1171, 4
        %v1173 = vadd.f32 %v1171, %v1172
        %v1174 = vrot.slane %v1173, 2
        %v1175 = vadd.f32 %v1173, %v1174
        %v1176 = vrot.slane %v1175, 1
        %v1177 = vadd.f32 %v1175, %v1176
        %v1178 = vsel %vm190, %v1128, 0.0
        %v1179 = vrot.slane %v1178, 4
        %v1180 = vadd.f32 %v1178, %v1179
        %v1181 = vrot.slane %v1180, 2
        %v1182 = vadd.f32 %v1180, %v1181
        %v1183 = vrot.slane %v1182, 1
        %v1184 = vadd.f32 %v1182, %v1183
        %vm1193 = vcmask 1041409
        %v1194 = vsel %vm1193, %v1142, %v1135
        %vm1195 = vcmask 1042434
        %v1196 = vsel %vm1195, %v1149, %v1194
        %vm1197 = vcmask 1043459
        %v1198 = vsel %vm1197, %v1156, %v1196
        %vm1199 = vcmask 1044484
        %v1200 = vsel %vm1199, %v1163, %v1198
        %vm1201 = vcmask 1045509
        %v1202 = vsel %vm1201, %v1170, %v1200
        %vm1203 = vcmask 1046534
        %v1204 = vsel %vm1203, %v1177, %v1202
        %vm1205 = vcmask 1047559
        %v1206 = vsel %vm1205, %v1184, %v1204
        %1208 = vst.msk [vmem:[%s176] sm:$0xff] %vm190, %v1206
        %s1209 = sand.u32 %s75, 1
        %s1210 = scalar_lea.sflag [#allocation4], %s1209
        %s1211 = sand.u32 %s75, 1
        %s1212 = smul.addr %s1211, 8
        %s1213 = scalar_lea.vmem [#allocation7], %s1212
        // Predicated region
        $region37: #{tpu_custom_call.1} parent=27 // pred_check
          %p1214 = pneg %p85
        $region38: #{tpu_custom_call.1} parent=27 // pred_check_branch
          %1216 = sbr.rel (%p1214) target = $region40
        $region39: #{tpu_custom_call.1} parent=27 // pred_region
          %s1218 = ssub.s32 128, 128
          %1219 = vsyncadd %s1210, %s1218
          %s1220 = smul.addr %s20, 128
          %s1221 = scalar_lea.hbm %s2, %s1220
          %s1223 = sshll.u32 %s1213, 4
          %s1224 = int_to_ptr.vmem [resolvable:$true] %s1223
          %1226 = dma.vmem_to_hbm [thread:$0]  %s1224, 128, %s1221, %s1210
        $region40: #{tpu_custom_call.1} parent=27 // pred_fallthru
          _
      $region28: #{tpu_custom_call.1} parent=5 // pred_fallthru
        _
      %p1227 = scmp.le.s32.totalorder 2, %s15
      // Predicated region
      $region41: #{tpu_custom_call.1} parent=5 // pred_check
        %p1228 = pneg %p1227
      $region42: #{tpu_custom_call.1} parent=5 // pred_check_branch
        %1230 = sbr.rel (%p1228) target = $region44
      $region43: #{tpu_custom_call.1} parent=5 // pred_region
        %s1231 = ssub.s32 %s15, 2
        // Predicated region
        $region45: #{tpu_custom_call.1} parent=43 // pred_check
          %p1232 = pneg %p91
        $region46: #{tpu_custom_call.1} parent=43 // pred_check_branch
          %1234 = sbr.rel (%p1232) target = $region48
        $region47: #{tpu_custom_call.1} parent=43 // pred_region
          %s1235 = sand.u32 %s76, 1
          %s1236 = scalar_lea.sflag [#allocation4], %s1235
          %s1237 = sand.u32 %s76, 1
          %s1238 = smul.addr %s1237, 8
          %s1239 = scalar_lea.vmem [#allocation7], %s1238
          %1240 = dma.done %s1236, 128
        $region48: #{tpu_custom_call.1} parent=43 // pred_fallthru
          _
      $region44: #{tpu_custom_call.1} parent=5 // pred_fallthru
        _
    $region6: #{tpu_custom_call.1} parent=1 // loop_footer
      %s19 = sadd.s32 1, %s15
    $region7: #{tpu_custom_call.1} parent=1 // loop_footer_branch
      %14 = sbr.rel target = $region3
    $region8: #{tpu_custom_call.1} parent=1 // loop_exit
      _
    %1241 = vsyncpa [#allocation3], 1
    %s1242 = scalar_lea.sflag [#allocation3], 1
    %1243 = vsyncpa %s1242, 1
    %1244 = vsyncpa [#allocation6], 1
    %1245 = vsyncpa [#allocation4], 1
    %s1246 = scalar_lea.sflag [#allocation4], 1
    %1247 = vsyncpa %s1246, 1

</llo_original>
